<compile_context>
chip_gen: v6e
topology: v6e:2x2x1
jax: 0.10.0
libtpu: 0.0.40
codegen_flags: <defaults>
</compile_context>

<pallas_src>
import jax
import jax.numpy as jnp
from jax import lax
from jax.experimental import pallas as pl
from jax.experimental.pallas import tpu as pltpu

_TILE_BYTES = 8 * 1024 * 1024   # per input tile; double-buffered -> ~16 MiB
_VMEM_CAP = 48 * 1024 * 1024    # < v7x 64 MiB physical; well under v5e/v6e


def _sublane(itemsize: int) -> int:
    # Sub-32-bit dtypes pack along sublanes: f32 -> 8, bf16 -> 16, int8 -> 32.
    return max(8, 32 // itemsize)


def _make_kernel(ts: int, seq_len: int, ragged: bool):
    """Running-max kernel over the seq grid axis (axis 1 of the grid)."""

    def kernel(emb_ref, out_ref):
        # emb_ref: (TB, TS, D) VMEM tile; out_ref: (TB, D) VMEM tile, resident
        # across the seq grid axis -> running-max accumulator.
        s = pl.program_id(1)

        def tile_max(masked: bool):
            t = emb_ref[...]
            if masked:
                # Ragged last seq tile: rows past seq_len are DMA padding
                # (garbage) -> force them to -inf before the reduce.
                pos = s * ts + lax.broadcasted_iota(jnp.int32, t.shape, 1)
                t = jnp.where(pos < seq_len, t, jnp.array(-jnp.inf, t.dtype))
            # NOTE: Mosaic streams this as vld+vmax with a (TB, D) live
            # accumulator; switch to a chunked lax.fori_loop only if a bundle
            # dump ever shows vreg spills here.
            return jnp.max(t, axis=1)

        def combine(m):
            @pl.when(s == 0)
            def _init():
                out_ref[...] = m

            @pl.when(s > 0)
            def _accum():
                out_ref[...] = jnp.maximum(out_ref[...], m)

        if not ragged:
            combine(tile_max(False))
        else:
            last = pl.num_programs(1) - 1

            @pl.when(s < last)
            def _interior():           # hot path: no masking cost
                combine(tile_max(False))

            @pl.when(s == last)
            def _tail():               # only the ragged tail pays the mask
                combine(tile_max(True))

    return kernel


def _pick_tiles(B, S, D, itemsize, tile_bytes):
    """Choose (TB, TS, ragged) honouring the (sublane, 128) layout rule.

    The seq (reduction, "arbitrary") tile is grown first; the batch
    ("parallel") tile takes the remaining budget and is capped so the parallel
    grid axis has >= 2 steps when B is large enough (v7x megacore).
    """
    sub = _sublane(itemsize)
    row_bytes = D * itemsize

    # --- seq tile -----------------------------------------------------------
    cap = max(sub, (tile_bytes // (sub * row_bytes)) // sub * sub)
    if cap >= S:
        TS, ragged = S, False                      # full seq, no masking
    else:
        # Prefer a multiple-of-sublane divisor of S in [cap/2, cap] (mask-free);
        # otherwise take TS = cap and mask the ragged tail tile in-kernel.
        TS, ragged = 0, True
        t = cap
        while t >= max(sub, cap // 2):
            if S % t == 0:
                TS, ragged = t, False
                break
            t -= sub
        if TS == 0:
            TS, ragged = cap, True

    # --- batch tile ---------------------------------------------------------
    budget = max(sub, (tile_bytes // (TS * row_bytes)) // sub * sub)
    TB = B if budget >= B else budget
    if B >= 2 * sub:
        # Keep >= 2 steps on the parallel axis so both v7x TensorCores work.
        half = max(sub, (-(-B // 2)) // sub * sub)
        TB = min(TB, half)
    TB = min(TB, B)
    return TB, TS, ragged


def _pooled_call(x, tile_bytes):
    B, S, D = x.shape
    itemsize = x.dtype.itemsize
    TB, TS, ragged = _pick_tiles(B, S, D, itemsize, tile_bytes)
    grid = (pl.cdiv(B, TB), pl.cdiv(S, TS))

    vmem_needed = (2 * TB * TS * D * itemsize   # double-buffered input tiles
                   + 2 * TB * D * itemsize      # resident output accumulator
                   + (2 << 20))                 # compiler scratch headroom
    vmem_limit = int(min(max(vmem_needed, 16 << 20), _VMEM_CAP))

    # TODO(synk): consider pltpu.CORE_PARALLEL on axis 0 if a v7x schedule
    # trace shows "parallel" alone does not shard the grid across both TCs.
    return pl.pallas_call(
        _make_kernel(TS, S, ragged),
        out_shape=jax.ShapeDtypeStruct((B, D), x.dtype),
        grid=grid,
        in_specs=[pl.BlockSpec((TB, TS, D), lambda i, s: (i, s, 0))],
        out_specs=pl.BlockSpec((TB, D), lambda i, s: (i, 0)),
        compiler_params=pltpu.CompilerParams(
            dimension_semantics=("parallel", "arbitrary"),
            vmem_limit_bytes=vmem_limit,
        ),
    )(x)


def max_pooling(emb_batch: jnp.ndarray, length_batch: jnp.ndarray = None,
                features_batch=None, *, tile_bytes: int = _TILE_BYTES
                ) -> jnp.ndarray:
    """Pallas equivalent of MaxPooling.forward: max over the seq axis (dim=1).

    length_batch / features_batch are accepted for signature parity but, as in
    the PyTorch module, are not used by the computation.
    """
    B, S, D = emb_batch.shape

    # Lane-fold small embed dims so every vreg lane is live: (B, S, D) ->
    # (B, S/k, k*D) with k*D == 128 (row-major regrouping, no HBM copy); the
    # kernel reduces over S/k, a tiny (B, k, D) max outside finishes it.
    x, fold = emb_batch, 1
    if D < 128 and 128 % D == 0:
        k = 128 // D
        if k > 1 and S % k == 0:
            fold = k
            x = emb_batch.reshape(B, S // k, k * D)
        # TODO(synk): when S % k != 0, padding S would need an extra HBM pass;
        # we fall back to the unfolded (lane-padded but correct) path instead.

    out = _pooled_call(x, tile_bytes)
    if fold > 1:
        out = jnp.max(out.reshape(B, fold, D), axis=1)
    return out


if __name__ == "__main__":
    key = jax.random.PRNGKey(0)
    k1, k2, k3, k4 = jax.random.split(key, 4)

    # 1) Small shape consistent with the module: exercises lane folding (D=32).
    B, S, D = 2, 8, 32
    emb = jax.random.normal(k1, (B, S, D), dtype=jnp.float32)
    lengths = jnp.full((B,), S, dtype=jnp.int32)   # unused (signature parity)
    out = max_pooling(emb, lengths)
    jax.block_until_ready(out)
    assert out.shape == (B, D)
    assert jnp.allclose(out, jnp.max(emb, axis=1))

    # 2) Larger shape: batch tiling, >= 2 parallel grid steps, full-seq tiles.
    B2, S2, D2 = 32, 1024, 256
    emb2 = jax.random.normal(k2, (B2, S2, D2), dtype=jnp.float32)
    out2 = max_pooling(emb2, jnp.full((B2,), S2, dtype=jnp.int32))
    jax.block_until_ready(out2)
    assert jnp.allclose(out2, jnp.max(emb2, axis=1))

    # 3) Awkward seq length + tiny tile budget: forces the ragged last seq
    #    tile and the in-kernel -inf masking path.
    B3, S3, D3 = 4, 100, 128
    emb3 = jax.random.normal(k3, (B3, S3, D3), dtype=jnp.float32)
    out3 = max_pooling(emb3, jnp.full((B3,), S3, dtype=jnp.int32),
                       tile_bytes=64 * 1024)
    jax.block_until_ready(out3)
    assert jnp.allclose(out3, jnp.max(emb3, axis=1))

    # 4) Small D where lane folding is not applicable (S % k != 0): unfolded
    #    fallback path, D equals the full array dim so layout is still legal.
    B4, S4, D4 = 2, 10, 32
    emb4 = jax.random.normal(k4, (B4, S4, D4), dtype=jnp.float32)
    out4 = max_pooling(emb4, jnp.full((B4,), S4, dtype=jnp.int32))
    jax.block_until_ready(out4)
    assert jnp.allclose(out4, jnp.max(emb4, axis=1))

    print("KERNEL_OK")
</pallas_src>

<mosaic_0001>
module attributes {stable_mosaic.version = 11 : i64} {
  func.func @kernel(%arg0: i32, %arg1: i32, %arg2: memref<2x2x128xf32, #tpu.memory_space<vmem>>, %arg3: memref<2x128xf32, #tpu.memory_space<vmem>>) attributes {dimension_semantics = [#tpu.dimension_semantics<parallel>, #tpu.dimension_semantics<arbitrary>], iteration_bounds = array<i64: 1, 1>, scalar_prefetch = 0 : i64, scratch_operands = 0 : i64, tpu.core_type = #tpu.core_type<tc>, window_params = [{transform_indices = @transform_0, window_bounds = array<i64: 2, 2, 128>}, {transform_indices = @transform_1, window_bounds = array<i64: 2, 128>}]} {
    %c0 = arith.constant 0 : index
    %c0_0 = arith.constant 0 : index
    %c0_1 = arith.constant 0 : index
    %0 = vector.load %arg2[%c0, %c0_0, %c0_1] : memref<2x2x128xf32, #tpu.memory_space<vmem>>, vector<2x2x128xf32>
    %cst = arith.constant dense<0xFF800000> : vector<2x128xf32>
    %1 = vector.multi_reduction <maximumf>, %0, %cst [1] : vector<2x2x128xf32> to vector<2x128xf32>
    %c0_i32 = arith.constant 0 : i32
    %2 = arith.cmpi eq, %arg1, %c0_i32 : i32
    %3 = arith.extui %2 : i1 to i32
    %c0_i32_2 = arith.constant 0 : i32
    %4 = arith.cmpi ne, %3, %c0_i32_2 : i32
    scf.if %4 {
      %c0_5 = arith.constant 0 : index
      %c0_6 = arith.constant 0 : index
      %8 = vector.load %arg3[%c0_5, %c0_6] : memref<2x128xf32, #tpu.memory_space<vmem>>, vector<2x128xf32>
      tpu.vector_store %arg3[%c0_5, %c0_6], %1 {strides = array<i32>} : memref<2x128xf32, #tpu.memory_space<vmem>>, vector<2x128xf32>,
    } else {
    }
    %c0_i32_3 = arith.constant 0 : i32
    %5 = arith.cmpi sgt, %arg1, %c0_i32_3 : i32
    %6 = arith.extui %5 : i1 to i32
    %c0_i32_4 = arith.constant 0 : i32
    %7 = arith.cmpi ne, %6, %c0_i32_4 : i32
    scf.if %7 {
      %c0_5 = arith.constant 0 : index
      %c0_6 = arith.constant 0 : index
      %8 = vector.load %arg3[%c0_5, %c0_6] : memref<2x128xf32, #tpu.memory_space<vmem>>, vector<2x128xf32>
      %9 = arith.maximumf %8, %1 : vector<2x128xf32>
      %c0_7 = arith.constant 0 : index
      %c0_8 = arith.constant 0 : index
      %10 = vector.load %arg3[%c0_7, %c0_8] : memref<2x128xf32, #tpu.memory_space<vmem>>, vector<2x128xf32>
      tpu.vector_store %arg3[%c0_7, %c0_8], %9 {strides = array<i32>} : memref<2x128xf32, #tpu.memory_space<vmem>>, vector<2x128xf32>,
    } else {
    }
    return
  }
  func.func @transform_0(%arg0: i32, %arg1: i32) -> (i32, i32, i32) {
    %c0_i32 = arith.constant 0 : i32
    %c0_i32_0 = arith.constant 0 : i32
    return %arg0, %arg1, %c0_i32 : i32, i32, i32
  }
  func.func @transform_1(%arg0: i32, %arg1: i32) -> (i32, i32) {
    %c0_i32 = arith.constant 0 : i32
    %c0_i32_0 = arith.constant 0 : i32
    return %arg0, %c0_i32 : i32, i32
  }
}

</mosaic_0001>

<llo_original>
// kernel: tpu_custom_call.1
$region0: #{tpu_custom_call.1}
  #allocation0 [shape = 'u32[]', space=smem, size = 0x4, offset = 0x4, fixed_abs, tag = 'smem constant byte address 0x4 - core index']
  #allocation1 [shape = 'u32[144,128]{1,0:T(1,128)}', space=vmem, size = 0x12000, scoped, tag = 'internal scratch']
  %s0 = inlined_call_operand.hbm [shape: f32[2,2,128], index: 0, kind: input, shape index: {}]
  %s1 = inlined_call_operand.hbm [shape: f32[2,128], index: 1, kind: output, shape index: {}]
  %s2 = sld [smem:[#allocation0]]
  $region26: #{tpu_custom_call.1} parent=0
    _
  %s4 = ssub.s32 1, %s2
  %s5 = scalar_select 0, %s4, %s2
  $region1: #{tpu_custom_call.1} parent=0
    #allocation2 [shape = 'u8[2048]{0}', space=vmem, size = 0x800, scoped, tag = 'input window, operand 0, single buffered']
    #allocation3 [shape = 's32[1]{0}', space=sflag, size = 0x4, scoped, tag = 'scoped memory for tpu_custom_call.1']
    #allocation4 [shape = 's32[1]{0}', space=sflag, size = 0x4, scoped, tag = 'scoped memory for tpu_custom_call.1']
    #allocation5 [shape = 'u8[1024]{0}', space=vmem, size = 0x400, scoped, tag = 'output window, operand 0, single buffered']
    %6 = vsyncpa [#allocation3], 0
    %7 = vsyncpa [#allocation4], 0
    // Predicated region
    $region2: #{tpu_custom_call.1} parent=1 // pred_check
      _
    $region3: #{tpu_custom_call.1} parent=1 // pred_check_branch
      %9 = sbr.rel (0) target = $region5
    $region4: #{tpu_custom_call.1} parent=1 // pred_region
      %s11 = ssub.s32 64, 64
      %12 = vsyncadd [#allocation3], %s11
      %s13 = sshll.u32 [#allocation2], 4
      %s14 = int_to_ptr.vmem [resolvable:$true] %s13
      %19 = dma.hbm_to_vmem [thread:$0]  %s0, 64, %s14, [#allocation3], 32, 32, 2
    $region5: #{tpu_custom_call.1} parent=1 // pred_fallthru
      _
    // Predicated region
    $region6: #{tpu_custom_call.1} parent=1 // pred_check
      _
    $region7: #{tpu_custom_call.1} parent=1 // pred_check_branch
      %21 = sbr.rel (0) target = $region9
    $region8: #{tpu_custom_call.1} parent=1 // pred_region
      %22 = dma.done [#allocation3], 64
    $region9: #{tpu_custom_call.1} parent=1 // pred_fallthru
      _
    %v23 = vld [vmem:[#allocation2] sm:$0x3]
    %v24 = vld [vmem:[#allocation2 + $0x2] sm:$0x3]
    %vm25 = vcmask 1041408
    %v26 = vsel %vm25, %v23, -inf
    %v27 = vrot.slane %v26, 4
    %v28 = vmax.f32 %v26, %v27
    %v29 = vrot.slane %v28, 2
    %v30 = vmax.f32 %v28, %v29
    %v31 = vrot.slane %v30, 1
    %v32 = vmax.f32 %v30, %v31
    %v33 = vsel %vm25, %v24, -inf
    %v34 = vrot.slane %v33, 4
    %v35 = vmax.f32 %v33, %v34
    %v36 = vrot.slane %v35, 2
    %v37 = vmax.f32 %v35, %v36
    %v38 = vrot.slane %v37, 1
    %v39 = vmax.f32 %v37, %v38
    %p40 = scmp.eq.s32.totalorder 0, 0
    // Predicated region
    $region10: #{tpu_custom_call.1} parent=1 // pred_check
      %p41 = pneg %p40
    $region11: #{tpu_custom_call.1} parent=1 // pred_check_branch
      %43 = sbr.rel (%p41) target = $region13
    $region12: #{tpu_custom_call.1} parent=1 // pred_region
      %vm46 = vcmask 1041409
      %v47 = vsel %vm46, %v39, %v32
      %49 = vst [vmem:[#allocation5] sm:$0x3] %v47
    $region13: #{tpu_custom_call.1} parent=1 // pred_fallthru
      _
    %p50 = scmp.gt.s32.totalorder 0, 0
    // Predicated region
    $region14: #{tpu_custom_call.1} parent=1 // pred_check
      %p51 = pneg %p50
    $region15: #{tpu_custom_call.1} parent=1 // pred_check_branch
      %53 = sbr.rel (%p51) target = $region17
    $region16: #{tpu_custom_call.1} parent=1 // pred_region
      %v54 = vld [vmem:[#allocation5] sm:$0x3]
      %vm57 = vcmask 1041409
      %v58 = vsel %vm57, %v39, %v32
      %v60 = vmax.f32 %v54, %v58
      %61 = vst [vmem:[#allocation5] sm:$0x3] %v60
    $region17: #{tpu_custom_call.1} parent=1 // pred_fallthru
      _
    // Predicated region
    $region18: #{tpu_custom_call.1} parent=1 // pred_check
      _
    $region19: #{tpu_custom_call.1} parent=1 // pred_check_branch
      %63 = sbr.rel (0) target = $region21
    $region20: #{tpu_custom_call.1} parent=1 // pred_region
      %s65 = ssub.s32 32, 32
      %66 = vsyncadd [#allocation4], %s65
      %s68 = sshll.u32 [#allocation5], 4
      %s69 = int_to_ptr.vmem [resolvable:$true] %s68
      %71 = dma.vmem_to_hbm [thread:$0]  %s69, 32, %s1, [#allocation4]
    $region21: #{tpu_custom_call.1} parent=1 // pred_fallthru
      _
    // Predicated region
    $region22: #{tpu_custom_call.1} parent=1 // pred_check
      _
    $region23: #{tpu_custom_call.1} parent=1 // pred_check_branch
      %73 = sbr.rel (0) target = $region25
    $region24: #{tpu_custom_call.1} parent=1 // pred_region
      %74 = dma.done [#allocation4], 32
    $region25: #{tpu_custom_call.1} parent=1 // pred_fallthru
      _
    %75 = vsyncpa [#allocation3], 1
    %76 = vsyncpa [#allocation4], 1

</llo_original>
